<compile_context>
chip_gen: v6e
topology: v6e:2x2x1
jax: 0.10.0
libtpu: 0.0.40
codegen_flags: <defaults>
</compile_context>

<pallas_src>
import functools

import jax
import jax.numpy as jnp
from jax.experimental import pallas as pl
from jax.experimental.pallas import tpu as pltpu


def _round_up(v, m):
    return (v + m - 1) // m * m


_ON_TPU = jax.default_backend() == "tpu"


def _vmem_budget_bytes():
    """~7/8 of the per-core VMEM capacity (generation-aware); safe fallback off-TPU."""
    cap = 64 << 20
    if _ON_TPU:
        try:
            cap = int(pltpu.get_tpu_info().vmem_capacity_bytes)
        except Exception:  # pragma: no cover - defensive
            cap = 64 << 20
    return (cap // 8) * 7


# ----------------------------------------------------------------------------------
# Kernels.  x block is (tile_n, C); w block is (C, tile_c) in (C_in, C_out) layout.
# When n_col_blocks > 1 the residual uses the j-th 128-aligned column slice of x
# (C_out == C_in, tile_c is a multiple of 128, so the start offset is lane-aligned).
# ----------------------------------------------------------------------------------
def _block_kernel(x_ref, w_ref, b_ref, o_ref, *, n_col_blocks, tile_c):
    x = x_ref[...]
    y = jnp.dot(x, w_ref[...], preferred_element_type=jnp.float32)
    if n_col_blocks == 1:
        res = x
    else:
        off = pl.program_id(1) * tile_c          # multiple of 128 by construction
        res = x_ref[:, pl.ds(off, tile_c)]
    y = y + b_ref[...].astype(jnp.float32) + res.astype(jnp.float32)
    o_ref[...] = jnp.maximum(y, 0.0).astype(o_ref.dtype)


def _block_kernel_dropout(x_ref, m_ref, w_ref, b_ref, o_ref, *, n_col_blocks, tile_c):
    x = x_ref[...]
    h = x * m_ref[...]                            # mask holds 0 or 1/(1-p): inverted dropout
    y = jnp.dot(h, w_ref[...], preferred_element_type=jnp.float32)
    if n_col_blocks == 1:
        res = x
    else:
        off = pl.program_id(1) * tile_c
        res = x_ref[:, pl.ds(off, tile_c)]
    y = y + b_ref[...].astype(jnp.float32) + res.astype(jnp.float32)   # residual = pre-dropout x
    o_ref[...] = jnp.maximum(y, 0.0).astype(o_ref.dtype)


# ----------------------------------------------------------------------------------
# Wrapper
# ----------------------------------------------------------------------------------
def block_forward(x, weight, bias, *, training=False, p=0.25, rng_key=None,
                  tile_n=None, tile_c=None):
    """x: (N, C); weight: (C_out, C_in) PyTorch layout; bias: (C_out,)."""
    N, c_in = x.shape
    c_out, c_in_w = weight.shape
    assert c_in == c_in_w and c_out == c_in, \
        "residual add requires channels_out == channels_in"

    use_dropout = bool(training) and p > 0.0
    x_b = jnp.dtype(x.dtype).itemsize
    w_b = jnp.dtype(weight.dtype).itemsize
    o_b = x_b

    C = _round_up(c_in, 128)                     # lane-dense channel dim
    budget = _vmem_budget_bytes()

    # ---- weight handling: resident (single-buffered on TPU) vs streamed column blocks
    single_buf_w = _ON_TPU                       # pl.Buffered(1) only on the TPU path
    w_bufs_resident = 1 if single_buf_w else 2
    if tile_c is not None:
        assert tile_c % 128 == 0 and C % tile_c == 0
        n_col_blocks = C // tile_c
    elif C * C * w_b * w_bufs_resident <= budget // 2:
        tile_c, n_col_blocks = C, 1              # resident weight
    else:
        # stream W in (C, tile_c) column blocks; tile_c must divide C (multiple of 128)
        m = C // 128
        best = 1
        for d in range(1, m + 1):
            if m % d == 0 and 2 * C * (128 * d) * w_b <= budget // 2:
                best = d
        tile_c = 128 * best
        n_col_blocks = C // tile_c

    if n_col_blocks == 1:
        w_bytes = C * C * w_b * w_bufs_resident
    else:
        w_bytes = 2 * C * tile_c * w_b           # streamed -> default double buffering

    # ---- row tile: target ~2 MiB per streamed x tile, keep several grid steps for
    #      megacore, then shrink until the (corrected) VMEM estimate fits the budget.
    if tile_n is None:
        tile_n = max(256, min(2048, (2 << 20) // max(1, C * x_b)))
        tile_n = min(tile_n, max(256, -(-N // 8)))      # >= ~8 row steps when N is large
    tile_n = int(min(max(tile_n, 8), _round_up(N, 8)))
    tile_n = _round_up(tile_n, 8)

    def _vmem_need(tn):
        need = w_bytes
        need += 2 * 8 * tile_c * w_b             # bias block (padded sublane), double-buffered
        need += 2 * tn * C * x_b                 # x tile, double-buffered
        if use_dropout:
            need += 2 * tn * C * x_b             # mask tile, double-buffered
            need += tn * C * x_b                 # h = x * mask temporary
        need += 2 * tn * tile_c * o_b            # out tile, double-buffered
        need += 3 * tn * tile_c * 4              # f32 accumulator / elementwise temps
        need += 4 << 20                          # compiler scratch headroom
        return need

    while tile_n > 8 and _vmem_need(tile_n) > budget:
        tile_n = max(8, _round_up(tile_n // 2, 8))

    # ---- operand prep: one-time weight transpose; pad channels only if unaligned ----
    w_t = jnp.asarray(weight).T                  # (C_in, C_out), one-time wrapper transpose
    if C != c_in:
        x_in = jnp.pad(x, ((0, 0), (0, C - c_in)))
        w_t = jnp.pad(w_t, ((0, C - c_in), (0, C - c_out)))
        b_in = jnp.pad(bias, (0, C - c_out))
    else:
        x_in, b_in = x, bias
    b2d = b_in.reshape(1, C)

    # ---- grid / BlockSpecs -----------------------------------------------------------
    grid = (pl.cdiv(N, tile_n), n_col_blocks)    # ragged last row tile handled by Pallas
    x_spec = pl.BlockSpec((tile_n, C), lambda i, j: (i, 0))     # resident across column axis
    m_spec = pl.BlockSpec((tile_n, C), lambda i, j: (i, 0))
    o_spec = pl.BlockSpec((tile_n, tile_c), lambda i, j: (i, j))
    w_map = lambda i, j: (0, j)
    b_map = lambda i, j: (0, j)
    if n_col_blocks == 1 and single_buf_w:
        # constant index map -> never re-fetched -> a second buffer is wasted VMEM
        w_spec = pl.BlockSpec((C, tile_c), w_map, pipeline_mode=pl.Buffered(1))
        b_spec = pl.BlockSpec((1, tile_c), b_map, pipeline_mode=pl.Buffered(1))
    else:
        w_spec = pl.BlockSpec((C, tile_c), w_map)
        b_spec = pl.BlockSpec((1, tile_c), b_map)

    params = pltpu.CompilerParams(
        dimension_semantics=("parallel", "arbitrary"),
        vmem_limit_bytes=int(budget),
    )
    out_shape = jax.ShapeDtypeStruct((N, C), x.dtype)

    if use_dropout:
        if rng_key is None:
            rng_key = jax.random.PRNGKey(0)
        keep = jax.random.bernoulli(rng_key, 1.0 - p, (N, c_in))
        mask = keep.astype(x.dtype) * jnp.asarray(1.0 / (1.0 - p), x.dtype)
        if C != c_in:
            mask = jnp.pad(mask, ((0, 0), (0, C - c_in)))
        kernel = functools.partial(_block_kernel_dropout,
                                   n_col_blocks=n_col_blocks, tile_c=tile_c)
        out = pl.pallas_call(
            kernel, out_shape=out_shape, grid=grid,
            in_specs=[x_spec, m_spec, w_spec, b_spec],
            out_specs=o_spec, compiler_params=params,
        )(x_in, mask, w_t, b2d)
    else:
        kernel = functools.partial(_block_kernel,
                                   n_col_blocks=n_col_blocks, tile_c=tile_c)
        out = pl.pallas_call(
            kernel, out_shape=out_shape, grid=grid,
            in_specs=[x_spec, w_spec, b_spec],
            out_specs=o_spec, compiler_params=params,
        )(x_in, w_t, b2d)

    if C != c_out:                               # only when channels had to be lane-padded
        out = out[:, :c_out]
    return out


# ----------------------------------------------------------------------------------
# Self-contained checks
# ----------------------------------------------------------------------------------
if __name__ == "__main__":
    key = jax.random.PRNGKey(0)
    kx, kw, kb, kd = jax.random.split(key, 4)

    # Small shapes consistent with the module: a batch of feature vectors.
    N, C = 8, 32
    x = jax.random.normal(kx, (N, C), dtype=jnp.float32)
    bound = 1.0 / float(C) ** 0.5                # nn.Linear default init range
    weight = jax.random.uniform(kw, (C, C), minval=-bound, maxval=bound, dtype=jnp.float32)
    bias = jax.random.uniform(kb, (C,), minval=-bound, maxval=bound, dtype=jnp.float32)

    # 1) Eval mode (Dropout == identity).
    out = jax.block_until_ready(block_forward(x, weight, bias, training=False))
    ref = jnp.maximum(x @ weight.T + bias + x, 0.0)
    assert out.shape == (N, C)
    assert jnp.allclose(out, ref, atol=1e-4, rtol=1e-4), "eval mismatch vs reference"

    # 2) Training mode (inverted dropout with a deterministic keep-mask).
    p = 0.25
    out_tr = jax.block_until_ready(
        block_forward(x, weight, bias, training=True, p=p, rng_key=kd))
    keep = jax.random.bernoulli(kd, 1.0 - p, (N, C))
    mask = keep.astype(x.dtype) * jnp.asarray(1.0 / (1.0 - p), x.dtype)
    ref_tr = jnp.maximum((x * mask) @ weight.T + bias + x, 0.0)
    assert out_tr.shape == (N, C)
    assert jnp.allclose(out_tr, ref_tr, atol=1e-4, rtol=1e-4), "train mismatch vs reference"

    # 3) Lane-aligned channels + ragged last row tile (no wrapper pad / output slice).
    N2, C2 = 20, 128
    x2 = jax.random.normal(kx, (N2, C2), dtype=jnp.float32)
    w2 = jax.random.uniform(kw, (C2, C2), minval=-0.1, maxval=0.1, dtype=jnp.float32)
    b2 = jax.random.uniform(kb, (C2,), minval=-0.1, maxval=0.1, dtype=jnp.float32)
    out2 = jax.block_until_ready(block_forward(x2, w2, b2, training=False))
    ref2 = jnp.maximum(x2 @ w2.T + b2 + x2, 0.0)
    assert out2.shape == (N2, C2)
    assert jnp.allclose(out2, ref2, atol=1e-4, rtol=1e-4), "ragged-row mismatch vs reference"

    # 4) Streamed-weight column-block path (second grid axis exercised explicitly).
    N3, C3 = 16, 256
    x3 = jax.random.normal(kd, (N3, C3), dtype=jnp.float32)
    w3 = jax.random.uniform(kw, (C3, C3), minval=-0.05, maxval=0.05, dtype=jnp.float32)
    b3 = jax.random.uniform(kb, (C3,), minval=-0.05, maxval=0.05, dtype=jnp.float32)
    out3 = jax.block_until_ready(block_forward(x3, w3, b3, training=False, tile_c=128))
    ref3 = jnp.maximum(x3 @ w3.T + b3 + x3, 0.0)
    assert out3.shape == (N3, C3)
    assert jnp.allclose(out3, ref3, atol=1e-4, rtol=1e-4), "streamed-W mismatch vs reference"

    print("KERNEL_OK")
</pallas_src>

<mosaic_0001>
module attributes {stable_mosaic.version = 11 : i64} {
  func.func @_block_kernel(%arg0: i32, %arg1: i32, %arg2: memref<8x128xf32, #tpu.memory_space<vmem>>, %arg3: memref<128x128xf32, #tpu.memory_space<vmem>>, %arg4: memref<1x128xf32, #tpu.memory_space<vmem>>, %arg5: memref<8x128xf32, #tpu.memory_space<vmem>>) attributes {dimension_semantics = [#tpu.dimension_semantics<parallel>, #tpu.dimension_semantics<arbitrary>], iteration_bounds = array<i64: 1, 1>, scalar_prefetch = 0 : i64, scratch_operands = 0 : i64, tpu.core_type = #tpu.core_type<tc>, window_params = [{transform_indices = @transform_0, window_bounds = array<i64: 8, 128>}, {transform_indices = @transform_1, window_bounds = array<i64: 128, 128>}, {transform_indices = @transform_2, window_bounds = array<i64: 1, 128>}, {transform_indices = @transform_3, window_bounds = array<i64: 8, 128>}]} {
    %c0 = arith.constant 0 : index
    %c0_0 = arith.constant 0 : index
    %0 = vector.load %arg2[%c0, %c0_0] : memref<8x128xf32, #tpu.memory_space<vmem>>, vector<8x128xf32>
    %c0_1 = arith.constant 0 : index
    %c0_2 = arith.constant 0 : index
    %1 = vector.load %arg3[%c0_1, %c0_2] : memref<128x128xf32, #tpu.memory_space<vmem>>, vector<128x128xf32>
    %cst = arith.constant dense<0.000000e+00> : vector<8x128xf32>
    %2 = tpu.matmul %0, %1, %cst {dimension_numbers = #tpu.dot_dimension_numbers<[1], [0], [0], [1], [0, 0, 1, 1], [], []>} : vector<8x128xf32>, vector<128x128xf32>, vector<8x128xf32> -> vector<8x128xf32>
    %c0_3 = arith.constant 0 : index
    %c0_4 = arith.constant 0 : index
    %3 = vector.load %arg4[%c0_3, %c0_4] : memref<1x128xf32, #tpu.memory_space<vmem>>, vector<1x128xf32>
    %4 = vector.broadcast %3 : vector<1x128xf32> to vector<8x128xf32>
    %5 = arith.addf %2, %4 : vector<8x128xf32>
    %6 = arith.addf %5, %0 : vector<8x128xf32>
    %cst_5 = arith.constant 0.000000e+00 : f32
    %7 = vector.broadcast %cst_5 : f32 to vector<8x128xf32>
    %8 = arith.maximumf %6, %7 : vector<8x128xf32>
    %c0_6 = arith.constant 0 : index
    %c0_7 = arith.constant 0 : index
    %9 = vector.load %arg5[%c0_6, %c0_7] : memref<8x128xf32, #tpu.memory_space<vmem>>, vector<8x128xf32>
    tpu.vector_store %arg5[%c0_6, %c0_7], %8 {strides = array<i32>} : memref<8x128xf32, #tpu.memory_space<vmem>>, vector<8x128xf32>,
    return
  }
  func.func @transform_0(%arg0: i32, %arg1: i32) -> (i32, i32) {
    %c0_i32 = arith.constant 0 : i32
    %c0_i32_0 = arith.constant 0 : i32
    return %arg0, %c0_i32 : i32, i32
  }
  func.func @transform_1(%arg0: i32, %arg1: i32) -> (i32, i32) {
    %c0_i32 = arith.constant 0 : i32
    %c0_i32_0 = arith.constant 0 : i32
    return %c0_i32, %arg1 : i32, i32
  }
  func.func @transform_2(%arg0: i32, %arg1: i32) -> (i32, i32) {
    %c0_i32 = arith.constant 0 : i32
    %c0_i32_0 = arith.constant 0 : i32
    return %c0_i32, %arg1 : i32, i32
  }
  func.func @transform_3(%arg0: i32, %arg1: i32) -> (i32, i32) {
    %c0_i32 = arith.constant 0 : i32
    return %arg0, %arg1 : i32, i32
  }
}

</mosaic_0001>

<llo_original>
// kernel: tpu_custom_call.1
$region0: #{tpu_custom_call.1}
  #allocation0 [shape = 'u32[]', space=smem, size = 0x4, offset = 0x4, fixed_abs, tag = 'smem constant byte address 0x4 - core index']
  #allocation1 [shape = 'u32[144,128]{1,0:T(1,128)}', space=vmem, size = 0x12000, scoped, tag = 'internal scratch']
  %s0 = inlined_call_operand.hbm [shape: f32[8,128], index: 0, kind: input, shape index: {}]
  %s1 = inlined_call_operand.hbm [shape: f32[128,128], index: 1, kind: input, shape index: {}]
  %s2 = inlined_call_operand.vmem [shape: f32[1,128], index: 2, kind: input, shape index: {}]
  %s3 = inlined_call_operand.hbm [shape: f32[8,128], index: 3, kind: output, shape index: {}]
  %s4 = sld [smem:[#allocation0]]
  $region30: #{tpu_custom_call.1} parent=0
    _
  %s6 = ssub.s32 1, %s4
  %s7 = scalar_select 0, %s6, %s4
  $region1: #{tpu_custom_call.1} parent=0
    #allocation2 [shape = 'u8[4096]{0}', space=vmem, size = 0x1000, scoped, tag = 'input window, operand 0, single buffered']
    #allocation3 [shape = 's32[1]{0}', space=sflag, size = 0x4, scoped, tag = 'scoped memory for tpu_custom_call.1']
    #allocation4 [shape = 's32[1]{0}', space=sflag, size = 0x4, scoped, tag = 'scoped memory for tpu_custom_call.1']
    #allocation5 [shape = 'u8[65536]{0}', space=vmem, size = 0x10000, scoped, tag = 'input window, operand 1, single buffered']
    #allocation6 [shape = 's32[1]{0}', space=sflag, size = 0x4, scoped, tag = 'scoped memory for tpu_custom_call.1']
    #allocation7 [shape = 'u8[4096]{0}', space=vmem, size = 0x1000, scoped, tag = 'output window, operand 0, single buffered']
    %8 = vsyncpa [#allocation3], 0
    %9 = vsyncpa [#allocation6], 0
    %10 = vsyncpa [#allocation4], 0
    // Predicated region
    $region2: #{tpu_custom_call.1} parent=1 // pred_check
      _
    $region3: #{tpu_custom_call.1} parent=1 // pred_check_branch
      %12 = sbr.rel (0) target = $region5
    $region4: #{tpu_custom_call.1} parent=1 // pred_region
      %s14 = ssub.s32 128, 128
      %15 = vsyncadd [#allocation3], %s14
      %s17 = sshll.u32 [#allocation2], 4
      %s18 = int_to_ptr.vmem [resolvable:$true] %s17
      %20 = dma.hbm_to_vmem [thread:$0]  %s0, 128, %s18, [#allocation3]
    $region5: #{tpu_custom_call.1} parent=1 // pred_fallthru
      _
    // Predicated region
    $region6: #{tpu_custom_call.1} parent=1 // pred_check
      _
    $region7: #{tpu_custom_call.1} parent=1 // pred_check_branch
      %22 = sbr.rel (0) target = $region9
    $region8: #{tpu_custom_call.1} parent=1 // pred_region
      %s24 = ssub.s32 2048, 2048
      %25 = vsyncadd [#allocation6], %s24
      %s26 = sshll.u32 [#allocation5], 4
      %s27 = int_to_ptr.vmem [resolvable:$true] %s26
      %32 = dma.hbm_to_vmem [thread:$0]  %s1, 2048, %s27, [#allocation6], 128, 128, 8
    $region9: #{tpu_custom_call.1} parent=1 // pred_fallthru
      _
    // Predicated region
    $region10: #{tpu_custom_call.1} parent=1 // pred_check
      _
    $region11: #{tpu_custom_call.1} parent=1 // pred_check_branch
      %34 = sbr.rel (0) target = $region13
    $region12: #{tpu_custom_call.1} parent=1 // pred_region
      _
    $region13: #{tpu_custom_call.1} parent=1 // pred_fallthru
      _
    // Predicated region
    $region14: #{tpu_custom_call.1} parent=1 // pred_check
      _
    $region15: #{tpu_custom_call.1} parent=1 // pred_check_branch
      %36 = sbr.rel (0) target = $region17
    $region16: #{tpu_custom_call.1} parent=1 // pred_region
      %37 = dma.done [#allocation3], 128
    $region17: #{tpu_custom_call.1} parent=1 // pred_fallthru
      _
    // Predicated region
    $region18: #{tpu_custom_call.1} parent=1 // pred_check
      _
    $region19: #{tpu_custom_call.1} parent=1 // pred_check_branch
      %39 = sbr.rel (0) target = $region21
    $region20: #{tpu_custom_call.1} parent=1 // pred_region
      %40 = dma.done [#allocation6], 2048
    $region21: #{tpu_custom_call.1} parent=1 // pred_fallthru
      _
    %v41 = vld [vmem:[#allocation2] sm:$0xff]
    %v42 = vld [vmem:[#allocation5] sm:$0xff]
    %v43 = vld [vmem:[#allocation5 + $0x8] sm:$0xff]
    %v44 = vld [vmem:[#allocation5 + $0x10] sm:$0xff]
    %v45 = vld [vmem:[#allocation5 + $0x18] sm:$0xff]
    %v46 = vld [vmem:[#allocation5 + $0x20] sm:$0xff]
    %v47 = vld [vmem:[#allocation5 + $0x28] sm:$0xff]
    %v48 = vld [vmem:[#allocation5 + $0x30] sm:$0xff]
    %v49 = vld [vmem:[#allocation5 + $0x38] sm:$0xff]
    %v50 = vld [vmem:[#allocation5 + $0x40] sm:$0xff]
    %v51 = vld [vmem:[#allocation5 + $0x48] sm:$0xff]
    %v52 = vld [vmem:[#allocation5 + $0x50] sm:$0xff]
    %v53 = vld [vmem:[#allocation5 + $0x58] sm:$0xff]
    %v54 = vld [vmem:[#allocation5 + $0x60] sm:$0xff]
    %v55 = vld [vmem:[#allocation5 + $0x68] sm:$0xff]
    %v56 = vld [vmem:[#allocation5 + $0x70] sm:$0xff]
    %v57 = vld [vmem:[#allocation5 + $0x78] sm:$0xff]
    %v58 = vld [vmem:[%s2] sm:$0x1]
    %v60 = vlaneseq
    %v61 = vshrl.u32 %v60, 7
    %v62 = vsub.s32 0, %v61
    %v63 = vrot.slane %v58, %v62
    %65 = vmatprep.subr.mxu0 0.0
    %66 = vmatpush1.msra.mxu0 %v57
    %67 = vmatprep.subr.mxu0 0.0
    %68 = vmatpush1.msra.mxu0 %v56
    %69 = vmatprep.subr.mxu0 0.0
    %70 = vmatpush1.msra.mxu0 %v55
    %71 = vmatprep.subr.mxu0 0.0
    %72 = vmatpush1.msra.mxu0 %v54
    %73 = vmatprep.subr.mxu0 0.0
    %74 = vmatpush1.msra.mxu0 %v53
    %75 = vmatprep.subr.mxu0 0.0
    %76 = vmatpush1.msra.mxu0 %v52
    %77 = vmatprep.subr.mxu0 0.0
    %78 = vmatpush1.msra.mxu0 %v51
    %79 = vmatprep.subr.mxu0 0.0
    %80 = vmatpush1.msra.mxu0 %v50
    %81 = vmatprep.subr.mxu0 0.0
    %82 = vmatpush1.msra.mxu0 %v49
    %83 = vmatprep.subr.mxu0 0.0
    %84 = vmatpush1.msra.mxu0 %v48
    %85 = vmatprep.subr.mxu0 0.0
    %86 = vmatpush1.msra.mxu0 %v47
    %87 = vmatprep.subr.mxu0 0.0
    %88 = vmatpush1.msra.mxu0 %v46
    %89 = vmatprep.subr.mxu0 0.0
    %90 = vmatpush1.msra.mxu0 %v45
    %91 = vmatprep.subr.mxu0 0.0
    %92 = vmatpush1.msra.mxu0 %v44
    %93 = vmatprep.subr.mxu0 0.0
    %94 = vmatpush1.msra.mxu0 %v43
    %95 = vmatprep.subr.mxu0 0.0
    %96 = vmatpush1.msra.mxu0 %v42
    %97 = vmatprep.subr.mxu0 0.0
    %98 = vmatpush2.msra.mxu0 0.0
    %99 = vmatprep.subr.mxu0 0.0
    %100 = vmatpush2.msra.mxu0 0.0
    %101 = vmatprep.subr.mxu0 0.0
    %102 = vmatpush2.msra.mxu0 0.0
    %103 = vmatprep.subr.mxu0 0.0
    %104 = vmatpush2.msra.mxu0 0.0
    %105 = vmatprep.subr.mxu0 0.0
    %106 = vmatpush2.msra.mxu0 0.0
    %107 = vmatprep.subr.mxu0 0.0
    %108 = vmatpush2.msra.mxu0 0.0
    %109 = vmatprep.subr.mxu0 0.0
    %110 = vmatpush2.msra.mxu0 0.0
    %111 = vmatprep.subr.mxu0 0.0
    %112 = vmatpush2.msra.mxu0 0.0
    %113 = vmatprep.subr.mxu0 0.0
    %114 = vmatpush2.msra.mxu0 0.0
    %115 = vmatprep.subr.mxu0 0.0
    %116 = vmatpush2.msra.mxu0 0.0
    %117 = vmatprep.subr.mxu0 0.0
    %118 = vmatpush2.msra.mxu0 0.0
    %119 = vmatprep.subr.mxu0 0.0
    %120 = vmatpush2.msra.mxu0 0.0
    %121 = vmatprep.subr.mxu0 0.0
    %122 = vmatpush2.msra.mxu0 0.0
    %123 = vmatprep.subr.mxu0 0.0
    %124 = vmatpush2.msra.mxu0 0.0
    %125 = vmatprep.subr.mxu0 0.0
    %126 = vmatpush2.msra.mxu0 0.0
    %127 = vmatprep.subr.mxu0 0.0
    %128 = vmatpush2.msra.mxu0 0.0
    %129 = vmatprep.mubr.f32.mxu0 0.0
    %130 = vmatmul.mubr.f32.gmra.mxu0 %v41
    %v131 = vpop.f32.mrf.mxu0
    %v132 = vadd.f32 %v63, %v131
    %v133 = vpop.f32.mrf.mxu0
    %134 = vdwg.mxu0
    %v135 = vadd.f32 %v132, %v41
    %v136 = vmax.f32 %v135, 0.0
    %137 = vst [vmem:[#allocation7] sm:$0xff] %v136
    // Predicated region
    $region22: #{tpu_custom_call.1} parent=1 // pred_check
      _
    $region23: #{tpu_custom_call.1} parent=1 // pred_check_branch
      %139 = sbr.rel (0) target = $region25
    $region24: #{tpu_custom_call.1} parent=1 // pred_region
      %s141 = ssub.s32 128, 128
      %142 = vsyncadd [#allocation4], %s141
      %s144 = sshll.u32 [#allocation7], 4
      %s145 = int_to_ptr.vmem [resolvable:$true] %s144
      %147 = dma.vmem_to_hbm [thread:$0]  %s145, 128, %s3, [#allocation4]
    $region25: #{tpu_custom_call.1} parent=1 // pred_fallthru
      _
    // Predicated region
    $region26: #{tpu_custom_call.1} parent=1 // pred_check
      _
    $region27: #{tpu_custom_call.1} parent=1 // pred_check_branch
      %149 = sbr.rel (0) target = $region29
    $region28: #{tpu_custom_call.1} parent=1 // pred_region
      %150 = dma.done [#allocation4], 128
    $region29: #{tpu_custom_call.1} parent=1 // pred_fallthru
      _
    %151 = vsyncpa [#allocation3], 1
    %152 = vsyncpa [#allocation6], 1
    %153 = vsyncpa [#allocation4], 1

</llo_original>
